<compile_context>
chip_gen: v7x
topology: tpu7x:2x2x1
jax: 0.10.0
libtpu: 0.0.40
codegen_flags: <defaults>
</compile_context>

<pallas_src>
import functools

import jax
import jax.numpy as jnp
import numpy as np
from jax import lax
from jax.experimental import pallas as pl
from jax.experimental.pallas import tpu as pltpu

_EPS = 1e-8  # matches torch.nn.CosineSimilarity default
_MiB = 1024 * 1024


# ---------------------------------------------------------------------------
# Kernel: masked mean-pool accumulated over S tiles + optional projection +
# (optionally fused) cosine scoring against pre-normalized, transposed labels.
# ---------------------------------------------------------------------------
def _zeroshot_kernel(hidden_ref, mask_ref, den_ref, *rest,
                     use_proj: bool, fused: bool):
    i = 0
    labels_ref = None
    proj_ref = None
    if fused:
        labels_ref = rest[i]
        i += 1
    if use_proj:
        proj_ref = rest[i]
        i += 1
    out_ref = rest[i]
    acc_ref = rest[i + 1]

    s_idx = pl.program_id(1)

    @pl.when(s_idx == 0)
    def _init():
        acc_ref[...] = jnp.zeros_like(acc_ref)

    # --- masked sum over this S tile, accumulated in f32 ---------------------
    # hidden arrives bf16 (halves HBM traffic); cast to f32 for exact accumulation.
    # The mask is 2-D (TB, TS): broadcasting it to (TB, TS, 1) costs a small XLU
    # relayout per step (TB*TS elems) but saves ~128x VMEM vs a 3-D mask block.
    h = hidden_ref[...].astype(jnp.float32)                 # (TB, TS, H)
    m = mask_ref[...]                                       # (TB, TS) f32
    acc_ref[...] += jnp.sum(h * m[:, :, None], axis=1)      # (TB, H)

    @pl.when(s_idx == pl.num_programs(1) - 1)
    def _finalize():
        # mean pool; fully-masked rows give NaN (0/0) exactly like the PyTorch ref.
        text = acc_ref[...] / den_ref[...]                               # (TB, H)
        if use_proj:
            text = jnp.dot(text, proj_ref[...],
                           preferred_element_type=jnp.float32)           # (TB, W)
        # cosine: normalize text rows (labels pre-normalized in the wrapper).
        # NOTE: each norm is clamped separately (max(||x||, eps)); newer torch
        # clamps the product of norms -- differs only for near-zero vectors.
        ss = jnp.sum(text * text, axis=-1, keepdims=True)
        inv_norm = lax.rsqrt(jnp.maximum(ss, jnp.float32(_EPS * _EPS)))
        text_n = text * inv_norm
        if fused:
            out_ref[...] = jnp.dot(text_n, labels_ref[...],
                                   preferred_element_type=jnp.float32)   # (TB, Lpad)
        else:
            out_ref[...] = text_n                                        # (TB, W)


# ---------------------------------------------------------------------------
# Tiling / VMEM planning
# ---------------------------------------------------------------------------
def _ceil_to(x, m):
    return -(-x // m) * m


def _vmem_limit_bytes():
    """~3/4 of physical VMEM: ~96 MiB on v5e/v6e, ~48 MiB on v7x."""
    cap = 64 * _MiB  # conservative default if the query is unavailable
    try:
        cap = int(pltpu.get_tpu_info().vmem_capacity_bytes)
    except Exception:
        pass
    return int(min(96 * _MiB, max(32 * _MiB, cap * 3 // 4)))


def _pick_batch_tile(B):
    """Batch tile: >= 2 tiles whenever B >= 16 (v7x megacore), TB <= 256, mult of 8."""
    if B <= 15:
        return B, B, 1
    nb = max(2, -(-B // 256))
    TB = _ceil_to(-(-B // nb), 8)
    return TB, nb * TB, nb


def _plan_tiles(B, S, H, itemsize, budget_bytes):
    """Pick (TB, B_pad, nb, TS, S_pad, ns) from an explicit VMEM budget."""
    # Per streamed hidden element: 2x (double-buffered input tile) plus ~8 B of
    # headroom for the f32 elementwise temps (cast + masked product) that Mosaic
    # may materialize when lowering the un-fused reduction (spill guard).
    per_elem = 2 * itemsize + 8
    cap_elems = max(budget_bytes, _MiB) // per_elem
    cap_elems = min(cap_elems, (8 * _MiB) // itemsize)     # ~8 MiB tile is plenty

    TB, B_pad, nb = _pick_batch_tile(B)
    ts_cap = cap_elems // max(TB * H, 1)
    if S <= ts_cap:
        return TB, B_pad, nb, S, S, 1

    # S must be tiled; the mask block's lane dim forces TS to a multiple of 128,
    # so shrink the batch tile first if 128 sequence rows would not fit the budget.
    tb_max = cap_elems // max(128 * H, 1)
    if TB > tb_max:
        TB = max(8, (tb_max // 8) * 8) if B > 8 else B     # pathological huge-H: accept overshoot
        nb = -(-B // TB)
        B_pad = nb * TB
        ts_cap = cap_elems // max(TB * H, 1)
    TS = max(128, (ts_cap // 128) * 128)
    t = TS
    while t >= 128:                                        # prefer a tile dividing S exactly
        if S % t == 0:
            return TB, B_pad, nb, t, S, S // t
        t -= 128
    S_pad = _ceil_to(S, TS)
    return TB, B_pad, nb, TS, S_pad, S_pad // TS


# ---------------------------------------------------------------------------
# Wrapper
# ---------------------------------------------------------------------------
def zeroshot_scores(hidden_states, attention_mask, label_encodings,
                    proj_mat=None, *, fuse_scoring=None):
    """Masked mean pool + optional projection + cosine scores. Returns (B, L) f32."""
    B, S, H = hidden_states.shape
    L = label_encodings.shape[0]
    use_proj = proj_mat is not None

    # --- batch-independent label-side precompute (hoisted; labels are fixed) ----
    labels = label_encodings.astype(jnp.float32)
    proj = None
    if use_proj:
        P = proj_mat.shape[1]
        Pp = _ceil_to(P, 128)                               # lane-dense projected width
        proj = jnp.pad(proj_mat.astype(jnp.float32), ((0, 0), (0, Pp - P)))
        labels = jnp.dot(labels, proj, preferred_element_type=jnp.float32)  # (L, Pp)
        W = Pp
    else:
        W = H
    lnorm = jnp.maximum(
        jnp.sqrt(jnp.sum(labels * labels, axis=-1, keepdims=True)),
        jnp.float32(_EPS))
    labels_n = labels / lnorm                               # (L, W) normalized

    Lpad = _ceil_to(L, 128)                                 # lane-dense score width
    labels_bytes = W * Lpad * 4
    if fuse_scoring is None:
        # keep the label block resident only while it stays small (v7x: 64 MiB VMEM)
        fuse_scoring = labels_bytes <= 8 * _MiB
    labels_t = None
    if fuse_scoring:
        labels_t = jnp.pad(labels_n.T, ((0, 0), (0, Lpad - L)))   # (W, Lpad)

    out_w = Lpad if fuse_scoring else W

    # --- VMEM budgeting + tiling ------------------------------------------------
    itemsize = jnp.dtype(hidden_states.dtype).itemsize
    vmem_limit = _vmem_limit_bytes()
    tb_ub = min(256, B)                                     # conservative resident estimate
    resident = tb_ub * H * 4 + 2 * tb_ub * out_w * 4        # acc + out (double-buffered)
    if fuse_scoring:
        resident += 2 * labels_bytes
    if use_proj:
        resident += 2 * H * W * 4
    TB, B_pad, nb, TS, S_pad, ns = _plan_tiles(
        B, S, H, itemsize, vmem_limit - resident)

    # --- mask / denominator precompute + padding to tile multiples --------------
    mask = attention_mask.astype(jnp.float32)               # (B, S)
    den = jnp.sum(mask, axis=1, keepdims=True)              # (B, 1)
    if B_pad != B or S_pad != S:
        hidden_states = jnp.pad(hidden_states,
                                ((0, B_pad - B), (0, S_pad - S), (0, 0)))
        mask = jnp.pad(mask, ((0, B_pad - B), (0, S_pad - S)))
        den = jnp.pad(den, ((0, B_pad - B), (0, 0)), constant_values=1.0)

    kernel = functools.partial(_zeroshot_kernel, use_proj=use_proj,
                               fused=fuse_scoring)

    def _run(single_buffer_consts):
        def const_spec(shape):
            # grid-invariant inputs: a single buffer is enough (fetched once)
            if single_buffer_consts:
                return pl.BlockSpec(shape, lambda b, s: (0, 0),
                                    pipeline_mode=pl.Buffered(1))
            return pl.BlockSpec(shape, lambda b, s: (0, 0))

        in_specs = [
            pl.BlockSpec((TB, TS, H), lambda b, s: (b, s, 0)),   # hidden (streamed)
            pl.BlockSpec((TB, TS), lambda b, s: (b, s)),         # mask, 2-D lane-dense
            pl.BlockSpec((TB, 1), lambda b, s: (b, 0)),          # pool denominator
        ]
        args = [hidden_states, mask, den]
        if fuse_scoring:
            in_specs.append(const_spec(labels_t.shape))
            args.append(labels_t)
        if use_proj:
            in_specs.append(const_spec(proj.shape))
            args.append(proj)

        return pl.pallas_call(
            kernel,
            out_shape=jax.ShapeDtypeStruct((B_pad, out_w), jnp.float32),
            grid_spec=pltpu.PrefetchScalarGridSpec(
                num_scalar_prefetch=0,
                grid=(nb, ns),
                in_specs=in_specs,
                out_specs=pl.BlockSpec((TB, out_w), lambda b, s: (b, 0)),
                scratch_shapes=[pltpu.VMEM((TB, H), jnp.float32)],
            ),
            compiler_params=pltpu.CompilerParams(
                dimension_semantics=("parallel", "arbitrary"),
                vmem_limit_bytes=vmem_limit),
        )(*args)

    want_single_buffer = fuse_scoring or use_proj
    if want_single_buffer:
        try:
            out = _run(True)
        except Exception:
            # pl.Buffered(1) unsupported on this JAX/Mosaic build -> default buffering
            out = _run(False)
    else:
        out = _run(False)

    if fuse_scoring:
        return out[:B, :L]
    # split-scoring path (large label sets): finish the score matmul in XLA,
    # tiled over L by the compiler; hidden states are never re-read.
    text_n = out[:B]                                        # (B, W) normalized
    return jnp.dot(text_n, labels_n.T, preferred_element_type=jnp.float32)


# ---------------------------------------------------------------------------
# Plain-JAX glue: synthetic deterministic backbone and a reference impl.
# ---------------------------------------------------------------------------
def backbone(embedding_table, input_ids):
    # stands in for `self.model(input_ids, attention_mask)[0]` -> (B, S, H)
    # TODO(synk): the real HF backbone transformer is an external dependency; a
    # deterministic bf16 embedding lookup is used as the hidden-state producer.
    return embedding_table[input_ids]


def reference_scores(hidden_states, attention_mask, label_encodings, proj_mat):
    mask3 = attention_mask[:, :, None].astype(jnp.float32)
    text = (hidden_states.astype(jnp.float32) * mask3).sum(1) / mask3.sum(1)
    labels = label_encodings.astype(jnp.float32)
    if proj_mat is not None:
        text = text @ proj_mat
        labels = labels @ proj_mat
    tn = jnp.maximum(jnp.linalg.norm(text, axis=-1, keepdims=True), _EPS)
    ln = jnp.maximum(jnp.linalg.norm(labels, axis=-1, keepdims=True), _EPS)
    return (text @ labels.T) / (tn * ln.T)


if __name__ == "__main__":
    # small shapes consistent with the forward pass
    B, S, H, L, P, V = 2, 8, 32, 4, 32, 50

    key = jax.random.PRNGKey(0)
    k_emb, k_lbl, k_proj, k_ids = jax.random.split(key, 4)

    embedding_table = (jax.random.normal(k_emb, (V, H), dtype=jnp.float32)
                       * 0.1).astype(jnp.bfloat16)          # backbone dtype bf16
    label_encodings = jax.random.normal(k_lbl, (L, H), dtype=jnp.float32)
    proj_mat = jax.random.normal(k_proj, (H, P), dtype=jnp.float32) * 0.2

    input_ids = jax.random.randint(k_ids, (B, S), 0, V)
    # deterministic attention mask with some padding in the second row
    attention_mask = jnp.array(
        [[1.0] * S, [1.0] * (S - 3) + [0.0] * 3], dtype=jnp.float32)

    hidden_states = backbone(embedding_table, input_ids)    # (B, S, H) bf16

    # projection_matrix setter used -> _use_projection_matrix = True
    scores = jax.block_until_ready(
        zeroshot_scores(hidden_states, attention_mask, label_encodings,
                        proj_mat))
    # default path: _use_projection_matrix = False
    scores_noproj = jax.block_until_ready(
        zeroshot_scores(hidden_states, attention_mask, label_encodings, None))
    # also exercise the split-scoring (large-label-set) path at small shapes
    scores_split = jax.block_until_ready(
        zeroshot_scores(hidden_states, attention_mask, label_encodings,
                        proj_mat, fuse_scoring=False))

    ref = reference_scores(hidden_states, attention_mask, label_encodings,
                           proj_mat)
    ref_noproj = reference_scores(hidden_states, attention_mask,
                                  label_encodings, None)

    np.testing.assert_allclose(np.asarray(scores), np.asarray(ref),
                               rtol=2e-5, atol=2e-5)
    np.testing.assert_allclose(np.asarray(scores_noproj),
                               np.asarray(ref_noproj), rtol=2e-5, atol=2e-5)
    np.testing.assert_allclose(np.asarray(scores_split), np.asarray(ref),
                               rtol=2e-5, atol=2e-5)
    assert scores.shape == (B, L)

    print("KERNEL_OK")
</pallas_src>

<mosaic_0001>
module attributes {stable_mosaic.version = 11 : i64} {
  func.func @_zeroshot_kernel(%arg0: i32, %arg1: i32, %arg2: memref<2x8x32xbf16, #tpu.memory_space<vmem>>, %arg3: memref<2x8xf32, #tpu.memory_space<vmem>>, %arg4: memref<2x1xf32, #tpu.memory_space<vmem>>, %arg5: memref<128x128xf32, #tpu.memory_space<vmem>>, %arg6: memref<32x128xf32, #tpu.memory_space<vmem>>, %arg7: memref<2x128xf32, #tpu.memory_space<vmem>>, %arg8: memref<2x32xf32, #tpu.memory_space<vmem>>) attributes {dimension_semantics = [#tpu.dimension_semantics<parallel>, #tpu.dimension_semantics<arbitrary>], iteration_bounds = array<i64: 1, 1>, scalar_prefetch = 0 : i64, scratch_operands = 1 : i64, tpu.core_type = #tpu.core_type<tc>, window_params = [{transform_indices = @transform_0, window_bounds = array<i64: 2, 8, 32>}, {transform_indices = @transform_1, window_bounds = array<i64: 2, 8>}, {transform_indices = @transform_2, window_bounds = array<i64: 2, 1>}, {pipeline_mode = #tpu.pipeline_mode<synchronous>, transform_indices = @transform_3, window_bounds = array<i64: 128, 128>}, {pipeline_mode = #tpu.pipeline_mode<synchronous>, transform_indices = @transform_4, window_bounds = array<i64: 32, 128>}, {transform_indices = @transform_5, window_bounds = array<i64: 2, 128>}]} {
    %c0_i32 = arith.constant 0 : i32
    %0 = arith.cmpi eq, %arg1, %c0_i32 : i32
    %1 = arith.extui %0 : i1 to i32
    %c0_i32_0 = arith.constant 0 : i32
    %2 = arith.cmpi ne, %1, %c0_i32_0 : i32
    scf.if %2 {
      %cst_11 = arith.constant 0.000000e+00 : f32
      %16 = vector.broadcast %cst_11 : f32 to vector<2x32xf32>
      %c0_12 = arith.constant 0 : index
      %c0_13 = arith.constant 0 : index
      %17 = vector.load %arg8[%c0_12, %c0_13] : memref<2x32xf32, #tpu.memory_space<vmem>>, vector<2x32xf32>
      tpu.vector_store %arg8[%c0_12, %c0_13], %16 {strides = array<i32>} : memref<2x32xf32, #tpu.memory_space<vmem>>, vector<2x32xf32>,
    } else {
    }
    %c0 = arith.constant 0 : index
    %c0_1 = arith.constant 0 : index
    %c0_2 = arith.constant 0 : index
    %3 = vector.load %arg2[%c0, %c0_1, %c0_2] : memref<2x8x32xbf16, #tpu.memory_space<vmem>>, vector<2x8x32xbf16>
    %4 = arith.extf %3 : vector<2x8x32xbf16> to vector<2x8x32xf32>
    %c0_3 = arith.constant 0 : index
    %c0_4 = arith.constant 0 : index
    %5 = vector.load %arg3[%c0_3, %c0_4] : memref<2x8xf32, #tpu.memory_space<vmem>>, vector<2x8xf32>
    %c0_5 = arith.constant 0 : index
    %c0_6 = arith.constant 0 : index
    %6 = vector.load %arg8[%c0_5, %c0_6] : memref<2x32xf32, #tpu.memory_space<vmem>>, vector<2x32xf32>
    %7 = vector.shape_cast %5 : vector<2x8xf32> to vector<2x8x1xf32>
    %8 = vector.broadcast %7 : vector<2x8x1xf32> to vector<2x8x32xf32>
    %9 = arith.mulf %4, %8 : vector<2x8x32xf32>
    %cst = arith.constant dense<0.000000e+00> : vector<2x32xf32>
    %10 = vector.multi_reduction <add>, %9, %cst [1] : vector<2x8x32xf32> to vector<2x32xf32>
    %11 = arith.addf %6, %10 : vector<2x32xf32>
    %c0_7 = arith.constant 0 : index
    %c0_8 = arith.constant 0 : index
    %12 = vector.load %arg8[%c0_7, %c0_8] : memref<2x32xf32, #tpu.memory_space<vmem>>, vector<2x32xf32>
    tpu.vector_store %arg8[%c0_7, %c0_8], %11 {strides = array<i32>} : memref<2x32xf32, #tpu.memory_space<vmem>>, vector<2x32xf32>,
    %c0_i32_9 = arith.constant 0 : i32
    %13 = arith.cmpi eq, %arg1, %c0_i32_9 : i32
    %14 = arith.extui %13 : i1 to i32
    %c0_i32_10 = arith.constant 0 : i32
    %15 = arith.cmpi ne, %14, %c0_i32_10 : i32
    scf.if %15 {
      %c0_11 = arith.constant 0 : index
      %c0_12 = arith.constant 0 : index
      %16 = vector.load %arg8[%c0_11, %c0_12] : memref<2x32xf32, #tpu.memory_space<vmem>>, vector<2x32xf32>
      %c0_13 = arith.constant 0 : index
      %c0_14 = arith.constant 0 : index
      %17 = vector.load %arg4[%c0_13, %c0_14] : memref<2x1xf32, #tpu.memory_space<vmem>>, vector<2x1xf32>
      %18 = vector.broadcast %17 : vector<2x1xf32> to vector<2x32xf32>
      %19 = arith.divf %16, %18 : vector<2x32xf32>
      %c0_15 = arith.constant 0 : index
      %c0_16 = arith.constant 0 : index
      %20 = vector.load %arg6[%c0_15, %c0_16] : memref<32x128xf32, #tpu.memory_space<vmem>>, vector<32x128xf32>
      %cst_17 = arith.constant dense<0.000000e+00> : vector<2x128xf32>
      %21 = tpu.matmul %19, %20, %cst_17 {dimension_numbers = #tpu.dot_dimension_numbers<[1], [0], [0], [1], [0, 0, 1, 1], [], []>} : vector<2x32xf32>, vector<32x128xf32>, vector<2x128xf32> -> vector<2x128xf32>
      %22 = arith.mulf %21, %21 : vector<2x128xf32>
      %cst_18 = arith.constant dense<0.000000e+00> : vector<2xf32>
      %23 = vector.multi_reduction <add>, %22, %cst_18 [1] : vector<2x128xf32> to vector<2xf32>
      %24 = vector.shape_cast %23 : vector<2xf32> to vector<2x1xf32>
      %cst_19 = arith.constant 1.000000e-16 : f32
      %25 = vector.broadcast %cst_19 : f32 to vector<2x1xf32>
      %26 = arith.maximumf %24, %25 : vector<2x1xf32>
      %27 = math.rsqrt %26 : vector<2x1xf32>
      %28 = vector.broadcast %27 : vector<2x1xf32> to vector<2x128xf32>
      %29 = arith.mulf %21, %28 : vector<2x128xf32>
      %c0_20 = arith.constant 0 : index
      %c0_21 = arith.constant 0 : index
      %30 = vector.load %arg5[%c0_20, %c0_21] : memref<128x128xf32, #tpu.memory_space<vmem>>, vector<128x128xf32>
      %cst_22 = arith.constant dense<0.000000e+00> : vector<2x128xf32>
      %31 = tpu.matmul %29, %30, %cst_22 {dimension_numbers = #tpu.dot_dimension_numbers<[1], [0], [0], [1], [0, 0, 1, 1], [], []>} : vector<2x128xf32>, vector<128x128xf32>, vector<2x128xf32> -> vector<2x128xf32>
      %c0_23 = arith.constant 0 : index
      %c0_24 = arith.constant 0 : index
      %32 = vector.load %arg7[%c0_23, %c0_24] : memref<2x128xf32, #tpu.memory_space<vmem>>, vector<2x128xf32>
      tpu.vector_store %arg7[%c0_23, %c0_24], %31 {strides = array<i32>} : memref<2x128xf32, #tpu.memory_space<vmem>>, vector<2x128xf32>,
    } else {
    }
    return
  }
  func.func @transform_0(%arg0: i32, %arg1: i32) -> (i32, i32, i32) {
    %c0_i32 = arith.constant 0 : i32
    %c0_i32_0 = arith.constant 0 : i32
    return %arg0, %arg1, %c0_i32 : i32, i32, i32
  }
  func.func @transform_1(%arg0: i32, %arg1: i32) -> (i32, i32) {
    %c0_i32 = arith.constant 0 : i32
    return %arg0, %arg1 : i32, i32
  }
  func.func @transform_2(%arg0: i32, %arg1: i32) -> (i32, i32) {
    %c0_i32 = arith.constant 0 : i32
    %c0_i32_0 = arith.constant 0 : i32
    return %arg0, %c0_i32 : i32, i32
  }
  func.func @transform_3(%arg0: i32, %arg1: i32) -> (i32, i32) {
    %c0_i32 = arith.constant 0 : i32
    %c0_i32_0 = arith.constant 0 : i32
    %c0_i32_1 = arith.constant 0 : i32
    return %c0_i32, %c0_i32_0 : i32, i32
  }
  func.func @transform_4(%arg0: i32, %arg1: i32) -> (i32, i32) {
    %c0_i32 = arith.constant 0 : i32
    %c0_i32_0 = arith.constant 0 : i32
    %c0_i32_1 = arith.constant 0 : i32
    return %c0_i32, %c0_i32_0 : i32, i32
  }
  func.func @transform_5(%arg0: i32, %arg1: i32) -> (i32, i32) {
    %c0_i32 = arith.constant 0 : i32
    %c0_i32_0 = arith.constant 0 : i32
    return %arg0, %c0_i32 : i32, i32
  }
}

module attributes {stable_mosaic.version = 11 : i64} {
  func.func @_zeroshot_kernel(%arg0: i32, %arg1: i32, %arg2: memref<2x8x32xbf16, #tpu.memory_space<vmem>>, %arg3: memref<2x8xf32, #tpu.memory_space<vmem>>, %arg4: memref<2x1xf32, #tpu.memory_space<vmem>>, %arg5: memref<128x128xf32, #tpu.memory_space<vmem>>, %arg6: memref<32x128xf32, #tpu.memory_space<vmem>>, %arg7: memref<2x128xf32, #tpu.memory_space<vmem>>, %arg8: memref<2x32xf32, #tpu.memory_space<vmem>>) attributes {dimension_semantics = [#tpu.dimension_semantics<parallel>, #tpu.dimension_semantics<arbitrary>], iteration_bounds = array<i64: 1, 1>, scalar_prefetch = 0 : i64, scratch_operands = 1 : i64, tpu.core_type = #tpu.core_type<tc>, window_params = [{transform_indices = @transform_0, window_bounds = array<i64: 2, 8, 32>}, {transform_indices = @transform_1, window_bounds = array<i64: 2, 8>}, {transform_indices = @transform_2, window_bounds = array<i64: 2, 1>}, {pipeline_mode = #tpu.pipeline_mode<synchronous>, transform_indices = @transform_3, window_bounds = array<i64: 128, 128>}, {pipeline_mode = #tpu.pipeline_mode<synchronous>, transform_indices = @transform_4, window_bounds = array<i64: 32, 128>}, {transform_indices = @transform_5, window_bounds = array<i64: 2, 128>}]} {
    %c0_i32 = arith.constant 0 : i32
    %0 = arith.cmpi eq, %arg1, %c0_i32 : i32
    %1 = arith.extui %0 : i1 to i32
    %c0_i32_0 = arith.constant 0 : i32
    %2 = arith.cmpi ne, %1, %c0_i32_0 : i32
    scf.if %2 {
      %cst_11 = arith.constant 0.000000e+00 : f32
      %16 = vector.broadcast %cst_11 : f32 to vector<2x32xf32>
      %c0_12 = arith.constant 0 : index
      %c0_13 = arith.constant 0 : index
      %17 = vector.load %arg8[%c0_12, %c0_13] : memref<2x32xf32, #tpu.memory_space<vmem>>, vector<2x32xf32>
      tpu.vector_store %arg8[%c0_12, %c0_13], %16 {strides = array<i32>} : memref<2x32xf32, #tpu.memory_space<vmem>>, vector<2x32xf32>,
    } else {
    }
    %c0 = arith.constant 0 : index
    %c0_1 = arith.constant 0 : index
    %c0_2 = arith.constant 0 : index
    %3 = vector.load %arg2[%c0, %c0_1, %c0_2] : memref<2x8x32xbf16, #tpu.memory_space<vmem>>, vector<2x8x32xbf16>
    %4 = arith.extf %3 : vector<2x8x32xbf16> to vector<2x8x32xf32>
    %c0_3 = arith.constant 0 : index
    %c0_4 = arith.constant 0 : index
    %5 = vector.load %arg3[%c0_3, %c0_4] : memref<2x8xf32, #tpu.memory_space<vmem>>, vector<2x8xf32>
    %c0_5 = arith.constant 0 : index
    %c0_6 = arith.constant 0 : index
    %6 = vector.load %arg8[%c0_5, %c0_6] : memref<2x32xf32, #tpu.memory_space<vmem>>, vector<2x32xf32>
    %7 = vector.shape_cast %5 : vector<2x8xf32> to vector<2x8x1xf32>
    %8 = vector.broadcast %7 : vector<2x8x1xf32> to vector<2x8x32xf32>
    %9 = arith.mulf %4, %8 : vector<2x8x32xf32>
    %cst = arith.constant dense<0.000000e+00> : vector<2x32xf32>
    %10 = vector.multi_reduction <add>, %9, %cst [1] : vector<2x8x32xf32> to vector<2x32xf32>
    %11 = arith.addf %6, %10 : vector<2x32xf32>
    %c0_7 = arith.constant 0 : index
    %c0_8 = arith.constant 0 : index
    %12 = vector.load %arg8[%c0_7, %c0_8] : memref<2x32xf32, #tpu.memory_space<vmem>>, vector<2x32xf32>
    tpu.vector_store %arg8[%c0_7, %c0_8], %11 {strides = array<i32>} : memref<2x32xf32, #tpu.memory_space<vmem>>, vector<2x32xf32>,
    %c0_i32_9 = arith.constant 0 : i32
    %13 = arith.cmpi eq, %arg1, %c0_i32_9 : i32
    %14 = arith.extui %13 : i1 to i32
    %c0_i32_10 = arith.constant 0 : i32
    %15 = arith.cmpi ne, %14, %c0_i32_10 : i32
    scf.if %15 {
      %c0_11 = arith.constant 0 : index
      %c0_12 = arith.constant 0 : index
      %16 = vector.load %arg8[%c0_11, %c0_12] : memref<2x32xf32, #tpu.memory_space<vmem>>, vector<2x32xf32>
      %c0_13 = arith.constant 0 : index
      %c0_14 = arith.constant 0 : index
      %17 = vector.load %arg4[%c0_13, %c0_14] : memref<2x1xf32, #tpu.memory_space<vmem>>, vector<2x1xf32>
      %18 = vector.broadcast %17 : vector<2x1xf32> to vector<2x32xf32>
      %19 = arith.divf %16, %18 : vector<2x32xf32>
      %c0_15 = arith.constant 0 : index
      %c0_16 = arith.constant 0 : index
      %20 = vector.load %arg6[%c0_15, %c0_16] : memref<32x128xf32, #tpu.memory_space<vmem>>, vector<32x128xf32>
      %cst_17 = arith.constant dense<0.000000e+00> : vector<2x128xf32>
      %21 = tpu.matmul %19, %20, %cst_17 {dimension_numbers = #tpu.dot_dimension_numbers<[1], [0], [0], [1], [0, 0, 1, 1], [], []>} : vector<2x32xf32>, vector<32x128xf32>, vector<2x128xf32> -> vector<2x128xf32>
      %22 = arith.mulf %21, %21 : vector<2x128xf32>
      %cst_18 = arith.constant dense<0.000000e+00> : vector<2xf32>
      %23 = vector.multi_reduction <add>, %22, %cst_18 [1] : vector<2x128xf32> to vector<2xf32>
      %24 = vector.shape_cast %23 : vector<2xf32> to vector<2x1xf32>
      %cst_19 = arith.constant 1.000000e-16 : f32
      %25 = vector.broadcast %cst_19 : f32 to vector<2x1xf32>
      %26 = arith.maximumf %24, %25 : vector<2x1xf32>
      %27 = math.rsqrt %26 : vector<2x1xf32>
      %28 = vector.broadcast %27 : vector<2x1xf32> to vector<2x128xf32>
      %29 = arith.mulf %21, %28 : vector<2x128xf32>
      %c0_20 = arith.constant 0 : index
      %c0_21 = arith.constant 0 : index
      %30 = vector.load %arg5[%c0_20, %c0_21] : memref<128x128xf32, #tpu.memory_space<vmem>>, vector<128x128xf32>
      %cst_22 = arith.constant dense<0.000000e+00> : vector<2x128xf32>
      %31 = tpu.matmul %29, %30, %cst_22 {dimension_numbers = #tpu.dot_dimension_numbers<[1], [0], [0], [1], [0, 0, 1, 1], [], []>} : vector<2x128xf32>, vector<128x128xf32>, vector<2x128xf32> -> vector<2x128xf32>
      %c0_23 = arith.constant 0 : index
      %c0_24 = arith.constant 0 : index
      %32 = vector.load %arg7[%c0_23, %c0_24] : memref<2x128xf32, #tpu.memory_space<vmem>>, vector<2x128xf32>
      tpu.vector_store %arg7[%c0_23, %c0_24], %31 {strides = array<i32>} : memref<2x128xf32, #tpu.memory_space<vmem>>, vector<2x128xf32>,
    } else {
    }
    return
  }
  func.func @transform_0(%arg0: i32, %arg1: i32) -> (i32, i32, i32) {
    %c0_i32 = arith.constant 0 : i32
    %c0_i32_0 = arith.constant 0 : i32
    return %arg0, %arg1, %c0_i32 : i32, i32, i32
  }
  func.func @transform_1(%arg0: i32, %arg1: i32) -> (i32, i32) {
    %c0_i32 = arith.constant 0 : i32
    return %arg0, %arg1 : i32, i32
  }
  func.func @transform_2(%arg0: i32, %arg1: i32) -> (i32, i32) {
    %c0_i32 = arith.constant 0 : i32
    %c0_i32_0 = arith.constant 0 : i32
    return %arg0, %c0_i32 : i32, i32
  }
  func.func @transform_3(%arg0: i32, %arg1: i32) -> (i32, i32) {
    %c0_i32 = arith.constant 0 : i32
    %c0_i32_0 = arith.constant 0 : i32
    %c0_i32_1 = arith.constant 0 : i32
    return %c0_i32, %c0_i32_0 : i32, i32
  }
  func.func @transform_4(%arg0: i32, %arg1: i32) -> (i32, i32) {
    %c0_i32 = arith.constant 0 : i32
    %c0_i32_0 = arith.constant 0 : i32
    %c0_i32_1 = arith.constant 0 : i32
    return %c0_i32, %c0_i32_0 : i32, i32
  }
  func.func @transform_5(%arg0: i32, %arg1: i32) -> (i32, i32) {
    %c0_i32 = arith.constant 0 : i32
    %c0_i32_0 = arith.constant 0 : i32
    return %arg0, %c0_i32 : i32, i32
  }
}

</mosaic_0001>

<llo_original>
// kernel: tpu_custom_call.1
$region0: #{tpu_custom_call.1}
  #allocation0 [shape = 'u32[]', space=smem, size = 0x4, offset = 0x4, fixed_abs, tag = 'smem constant byte address 0x4 - core index']
  #allocation1 [shape = 'u32[144,128]{1,0:T(1,128)}', space=vmem, size = 0x12000, scoped, tag = 'internal scratch']
  #allocation2 [shape = 'f32[2,32]{1,0:T(2,128)}', space=vmem, size = 0x400, scoped, tag = 'scratch operand']
  %s0 = inlined_call_operand.hbm [shape: bf16[2,8,32], index: 0, kind: input, shape index: {}]
  %s1 = inlined_call_operand.vmem [shape: f32[2,8], index: 1, kind: input, shape index: {}]
  %s2 = inlined_call_operand.vmem [shape: f32[2,1], index: 2, kind: input, shape index: {}]
  %s3 = inlined_call_operand.hbm [shape: f32[128,128], index: 3, kind: input, shape index: {}]
  %s4 = inlined_call_operand.hbm [shape: f32[32,128], index: 4, kind: input, shape index: {}]
  %s5 = inlined_call_operand.hbm [shape: f32[2,128], index: 5, kind: output, shape index: {}]
  %s6 = sld [smem:[#allocation0]]
  $region50: #{tpu_custom_call.1} parent=0
    _
  %s8 = ssub.s32 1, %s6
  %s9 = scalar_select 0, %s8, %s6
  $region1: #{tpu_custom_call.1} parent=0
    #allocation3 [shape = 'u8[4096]{0}', space=vmem, size = 0x1000, scoped, tag = 'input window, operand 0, single buffered']
    #allocation4 [shape = 's32[1]{0}', space=sflag, size = 0x4, scoped, tag = 'scoped memory for tpu_custom_call.1']
    #allocation5 [shape = 's32[1]{0}', space=sflag, size = 0x4, scoped, tag = 'scoped memory for tpu_custom_call.1']
    #allocation6 [shape = 'u8[65536]{0}', space=vmem, size = 0x10000, scoped, tag = 'input window, operand 3, single buffered']
    #allocation7 [shape = 's32[1]{0}', space=sflag, size = 0x4, scoped, tag = 'scoped memory for tpu_custom_call.1']
    #allocation8 [shape = 'u8[16384]{0}', space=vmem, size = 0x4000, scoped, tag = 'input window, operand 4, single buffered']
    #allocation9 [shape = 'u8[1024]{0}', space=vmem, size = 0x400, scoped, tag = 'output window, operand 0, single buffered']
    %10 = vsyncpa [#allocation4], 0
    %11 = vsyncpa [#allocation7], 0
    %12 = vsyncpa [#allocation5], 0
    // Predicated region
    $region2: #{tpu_custom_call.1} parent=1 // pred_check
      _
    $region3: #{tpu_custom_call.1} parent=1 // pred_check_branch
      %14 = sbr.rel (0) target = $region5
    $region4: #{tpu_custom_call.1} parent=1 // pred_region
      %s16 = ssub.s32 128, 128
      %17 = vsyncadd [#allocation4], %s16
      %s18 = sshll.u32 [#allocation3], 4
      %s19 = int_to_ptr.vmem [resolvable:$true] %s18
      %24 = dma.hbm_to_vmem [thread:$0]  %s0, 128, %s19, [#allocation4], 64, 64, 4
    $region5: #{tpu_custom_call.1} parent=1 // pred_fallthru
      _
    // Predicated region
    $region6: #{tpu_custom_call.1} parent=1 // pred_check
      _
    $region7: #{tpu_custom_call.1} parent=1 // pred_check_branch
      %26 = sbr.rel (0) target = $region9
    $region8: #{tpu_custom_call.1} parent=1 // pred_region
      _
    $region9: #{tpu_custom_call.1} parent=1 // pred_fallthru
      _
    // Predicated region
    $region10: #{tpu_custom_call.1} parent=1 // pred_check
      _
    $region11: #{tpu_custom_call.1} parent=1 // pred_check_branch
      %28 = sbr.rel (0) target = $region13
    $region12: #{tpu_custom_call.1} parent=1 // pred_region
      _
    $region13: #{tpu_custom_call.1} parent=1 // pred_fallthru
      _
    // Predicated region
    $region14: #{tpu_custom_call.1} parent=1 // pred_check
      _
    $region15: #{tpu_custom_call.1} parent=1 // pred_check_branch
      %30 = sbr.rel (0) target = $region17
    $region16: #{tpu_custom_call.1} parent=1 // pred_region
      %s32 = ssub.s32 2048, 2048
      %33 = vsyncadd [#allocation7], %s32
      %s34 = sshll.u32 [#allocation6], 4
      %s35 = int_to_ptr.vmem [resolvable:$true] %s34
      %40 = dma.hbm_to_vmem [thread:$0]  %s3, 2048, %s35, [#allocation7], 128, 128, 8
    $region17: #{tpu_custom_call.1} parent=1 // pred_fallthru
      _
    // Predicated region
    $region18: #{tpu_custom_call.1} parent=1 // pred_check
      _
    $region19: #{tpu_custom_call.1} parent=1 // pred_check_branch
      %42 = sbr.rel (0) target = $region21
    $region20: #{tpu_custom_call.1} parent=1 // pred_region
      %s44 = ssub.s32 512, 512
      %45 = vsyncadd [#allocation7], %s44
      %s46 = sshll.u32 [#allocation8], 4
      %s47 = int_to_ptr.vmem [resolvable:$true] %s46
      %52 = dma.hbm_to_vmem [thread:$0]  %s4, 512, %s47, [#allocation7], 128, 128, 8
    $region21: #{tpu_custom_call.1} parent=1 // pred_fallthru
      _
    // Predicated region
    $region22: #{tpu_custom_call.1} parent=1 // pred_check
      _
    $region23: #{tpu_custom_call.1} parent=1 // pred_check_branch
      %54 = sbr.rel (0) target = $region25
    $region24: #{tpu_custom_call.1} parent=1 // pred_region
      %55 = dma.done [#allocation4], 128
    $region25: #{tpu_custom_call.1} parent=1 // pred_fallthru
      _
    // Predicated region
    $region26: #{tpu_custom_call.1} parent=1 // pred_check
      _
    $region27: #{tpu_custom_call.1} parent=1 // pred_check_branch
      %57 = sbr.rel (0) target = $region29
    $region28: #{tpu_custom_call.1} parent=1 // pred_region
      %58 = dma.done [#allocation7], 2048
    $region29: #{tpu_custom_call.1} parent=1 // pred_fallthru
      _
    // Predicated region
    $region30: #{tpu_custom_call.1} parent=1 // pred_check
      _
    $region31: #{tpu_custom_call.1} parent=1 // pred_check_branch
      %60 = sbr.rel (0) target = $region33
    $region32: #{tpu_custom_call.1} parent=1 // pred_region
      %61 = dma.done [#allocation7], 512
    $region33: #{tpu_custom_call.1} parent=1 // pred_fallthru
      _
    %p62 = scmp.eq.s32.totalorder 0, 0
    // Predicated region
    $region34: #{tpu_custom_call.1} parent=1 // pred_check
      %p63 = pneg %p62
    $region35: #{tpu_custom_call.1} parent=1 // pred_check_branch
      %65 = sbr.rel (%p63) target = $region37
    $region36: #{tpu_custom_call.1} parent=1 // pred_region
      %vm66 = vcmask 254976
      %67 = vst.msk [vmem:[#allocation2] sm:$0x3] %vm66, 0.0
    $region37: #{tpu_custom_call.1} parent=1 // pred_fallthru
      _
    %v68 = vld [vmem:[#allocation3] sm:$0xf]
    %v69 = vld [vmem:[#allocation3 + $0x4] sm:$0xf]
    %v70 = vunpack.c.l.bf16 %v68
    %v71 = vunpack.c.l.bf16 %v69
    %v72 = vld [vmem:[%s1] sm:$0x3]
    %v73 = vld [vmem:[#allocation2] sm:$0x3]
    %v74 = vlaneseq
    %v75 = vshrl.u32 %v74, 7
    %v76 = vsub.s32 0, %v75
    %v77 = vrot.slane %v72, %v76
    %79 = vbcast.lane.b32.xlu0 %v77, 256
    %v80 = vpop.permute.xlu0 %79
    %v81 = vlaneseq
    %v82 = vshrl.u32 %v81, 7
    %v83 = vsub.s32 1, %v82
    %v84 = vrot.slane %v72, %v83
    %86 = vbcast.lane.b32.xlu0 %v84, 256
    %v87 = vpop.permute.xlu0 %86
    %v88 = vmul.f32 %v70, %v80
    %v89 = vmul.f32 %v71, %v87
    %vm90 = vcmask 261120
    %v91 = vsel %vm90, %v88, 0.0
    %v92 = vrot.slane %v91, 4
    %v93 = vadd.f32 %v91, %v92
    %v94 = vrot.slane %v93, 2
    %v95 = vadd.f32 %v93, %v94
    %v96 = vrot.slane %v95, 1
    %v97 = vadd.f32 %v95, %v96
    %v98 = vsel %vm90, %v89, 0.0
    %v99 = vrot.slane %v98, 4
    %v100 = vadd.f32 %v98, %v99
    %v101 = vrot.slane %v100, 2
    %v102 = vadd.f32 %v100, %v101
    %v103 = vrot.slane %v102, 1
    %v104 = vadd.f32 %v102, %v103
    %vm107 = vcmask 1041409
    %v108 = vsel %vm107, %v104, %v97
    %v110 = vadd.f32 %v73, %v108
    %vm111 = vcmask 254976
    %112 = vst.msk [vmem:[#allocation2] sm:$0x3] %vm111, %v110
    // Predicated region
    $region38: #{tpu_custom_call.1} parent=1 // pred_check
      %p113 = pneg %p62
    $region39: #{tpu_custom_call.1} parent=1 // pred_check_branch
      %115 = sbr.rel (%p113) target = $region41
    $region40: #{tpu_custom_call.1} parent=1 // pred_region
      %v116 = vld [vmem:[#allocation2] sm:$0x3]
      %v117 = vld [vmem:[%s2] sm:$0x3]
      %119 = vset.pattern.permute.xlu0 0
      %120 = vperm.xlu0 %119, %v117
      %v121 = vpop.permute.xlu0 %120
      %v123 = vrcp.pop %v121
      %v124 = vmul.f32 %v116, %v123
      %v125 = vld [vmem:[#allocation8] sm:$0xff]
      %v126 = vld [vmem:[#allocation8 + $0x8] sm:$0xff]
      %v127 = vld [vmem:[#allocation8 + $0x10] sm:$0xff]
      %v128 = vld [vmem:[#allocation8 + $0x18] sm:$0xff]
      %v130 = vsel %vm90, %v124, 0
      %132 = vmatprep.subr.mxu0 0.0
      %133 = vmatpush1.msra.mxu0 %v125
      %134 = vmatprep.subr.mxu0 0.0
      %135 = vmatpush1.msra.mxu0 %v126
      %136 = vmatprep.subr.mxu0 0.0
      %137 = vmatpush1.msra.mxu0 %v127
      %138 = vmatprep.subr.mxu0 0.0
      %139 = vmatpush1.msra.mxu0 %v128
      %140 = vmatprep.subr.mxu0 0.0
      %141 = vmatpush1.msra.mxu0 0.0
      %142 = vmatprep.subr.mxu0 0.0
      %143 = vmatpush1.msra.mxu0 0.0
      %144 = vmatprep.subr.mxu0 0.0
      %145 = vmatpush1.msra.mxu0 0.0
      %146 = vmatprep.subr.mxu0 0.0
      %147 = vmatpush1.msra.mxu0 0.0
      %148 = vmatprep.subr.mxu0 0.0
      %149 = vmatpush1.msra.mxu0 0.0
      %150 = vmatprep.subr.mxu0 0.0
      %151 = vmatpush1.msra.mxu0 0.0
      %152 = vmatprep.subr.mxu0 0.0
      %153 = vmatpush1.msra.mxu0 0.0
      %154 = vmatprep.subr.mxu0 0.0
      %155 = vmatpush1.msra.mxu0 0.0
      %156 = vmatprep.subr.mxu0 0.0
      %157 = vmatpush1.msra.mxu0 0.0
      %158 = vmatprep.subr.mxu0 0.0
      %159 = vmatpush1.msra.mxu0 0.0
      %160 = vmatprep.subr.mxu0 0.0
      %161 = vmatpush1.msra.mxu0 0.0
      %162 = vmatprep.subr.mxu0 0.0
      %163 = vmatpush1.msra.mxu0 0.0
      %164 = vmatprep.subr.mxu0 0.0
      %165 = vmatpush1.msra.mxu0 0.0
      %166 = vmatprep.subr.mxu0 0.0
      %167 = vmatpush1.msra.mxu0 0.0
      %168 = vmatprep.subr.mxu0 0.0
      %169 = vmatpush1.msra.mxu0 0.0
      %170 = vmatprep.subr.mxu0 0.0
      %171 = vmatpush1.msra.mxu0 0.0
      %172 = vmatprep.subr.mxu0 0.0
      %173 = vmatpush1.msra.mxu0 0.0
      %174 = vmatprep.subr.mxu0 0.0
      %175 = vmatpush1.msra.mxu0 0.0
      %176 = vmatprep.subr.mxu0 0.0
      %177 = vmatpush1.msra.mxu0 0.0
      %178 = vmatprep.subr.mxu0 0.0
      %179 = vmatpush1.msra.mxu0 0.0
      %180 = vmatprep.subr.mxu0 0.0
      %181 = vmatpush1.msra.mxu0 0.0
      %182 = vmatprep.subr.mxu0 0.0
      %183 = vmatpush1.msra.mxu0 0.0
      %184 = vmatprep.subr.mxu0 0.0
      %185 = vmatpush1.msra.mxu0 0.0
      %186 = vmatprep.subr.mxu0 0.0
      %187 = vmatpush1.msra.mxu0 0.0
      %188 = vmatprep.subr.mxu0 0.0
      %189 = vmatpush1.msra.mxu0 0.0
      %190 = vmatprep.subr.mxu0 0.0
      %191 = vmatpush1.msra.mxu0 0.0
      %192 = vmatprep.subr.mxu0 0.0
      %193 = vmatpush1.msra.mxu0 0.0
      %194 = vmatprep.subr.mxu0 0.0
      %195 = vmatpush1.msra.mxu0 0.0
      %196 = vmatprep.mubr.f32.mxu0 0.0
      %197 = vmatmul.mubr.f32.gmra.mrb[0].mxu0 %v130
      %v198 = vpop.f32.mrb[0].mxu0
      %v199 = vadd.f32 0.0, %v198
      %v200 = vpop.f32.mrb[0].mxu0
      %201 = vdwg.mxu0
      %v202 = vmul.f32 %v199, %v199
      %vm203 = vcmask 1041408
      %v204 = vsel %vm203, %v202, 0.0
      %205 = vadd.xlane.f32.xlu0 %v204
      %v206 = vpop.xlane.xlu0 %205
      %v207 = vmax.f32 %v206, 1e-16
      %v208 = vrsqrt.pop %v207
      %v209 = vmul.f32 %v199, %v208
      %v210 = vld [vmem:[#allocation6] sm:$0xff]
      %v211 = vld [vmem:[#allocation6 + $0x8] sm:$0xff]
      %v212 = vld [vmem:[#allocation6 + $0x10] sm:$0xff]
      %v213 = vld [vmem:[#allocation6 + $0x18] sm:$0xff]
      %v214 = vld [vmem:[#allocation6 + $0x20] sm:$0xff]
      %v215 = vld [vmem:[#allocation6 + $0x28] sm:$0xff]
      %v216 = vld [vmem:[#allocation6 + $0x30] sm:$0xff]
      %v217 = vld [vmem:[#allocation6 + $0x38] sm:$0xff]
      %v218 = vld [vmem:[#allocation6 + $0x40] sm:$0xff]
      %v219 = vld [vmem:[#allocation6 + $0x48] sm:$0xff]
      %v220 = vld [vmem:[#allocation6 + $0x50] sm:$0xff]
      %v221 = vld [vmem:[#allocation6 + $0x58] sm:$0xff]
      %v222 = vld [vmem:[#allocation6 + $0x60] sm:$0xff]
      %v223 = vld [vmem:[#allocation6 + $0x68] sm:$0xff]
      %v224 = vld [vmem:[#allocation6 + $0x70] sm:$0xff]
      %v225 = vld [vmem:[#allocation6 + $0x78] sm:$0xff]
      %226 = vmatprep.subr.mxu0 0.0
      %227 = vmatpush1.msra.mxu0 %v210
      %228 = vmatprep.subr.mxu0 0.0
      %229 = vmatpush1.msra.mxu0 %v211
      %230 = vmatprep.subr.mxu0 0.0
      %231 = vmatpush1.msra.mxu0 %v212
      %232 = vmatprep.subr.mxu0 0.0
      %233 = vmatpush1.msra.mxu0 %v213
      %234 = vmatprep.subr.mxu0 0.0
      %235 = vmatpush1.msra.mxu0 %v214
      %236 = vmatprep.subr.mxu0 0.0
      %237 = vmatpush1.msra.mxu0 %v215
      %238 = vmatprep.subr.mxu0 0.0
      %239 = vmatpush1.msra.mxu0 %v216
      %240 = vmatprep.subr.mxu0 0.0
      %241 = vmatpush1.msra.mxu0 %v217
      %242 = vmatprep.subr.mxu0 0.0
      %243 = vmatpush1.msra.mxu0 %v218
      %244 = vmatprep.subr.mxu0 0.0
      %245 = vmatpush1.msra.mxu0 %v219
      %246 = vmatprep.subr.mxu0 0.0
      %247 = vmatpush1.msra.mxu0 %v220
      %248 = vmatprep.subr.mxu0 0.0
      %249 = vmatpush1.msra.mxu0 %v221
      %250 = vmatprep.subr.mxu0 0.0
      %251 = vmatpush1.msra.mxu0 %v222
      %252 = vmatprep.subr.mxu0 0.0
      %253 = vmatpush1.msra.mxu0 %v223
      %254 = vmatprep.subr.mxu0 0.0
      %255 = vmatpush1.msra.mxu0 %v224
      %256 = vmatprep.subr.mxu0 0.0
      %257 = vmatpush1.msra.mxu0 %v225
      %258 = vmatprep.subr.mxu0 0.0
      %259 = vmatpush1.msra.mxu0 0.0
      %260 = vmatprep.subr.mxu0 0.0
      %261 = vmatpush1.msra.mxu0 0.0
      %262 = vmatprep.subr.mxu0 0.0
      %263 = vmatpush1.msra.mxu0 0.0
      %264 = vmatprep.subr.mxu0 0.0
      %265 = vmatpush1.msra.mxu0 0.0
      %266 = vmatprep.subr.mxu0 0.0
      %267 = vmatpush1.msra.mxu0 0.0
      %268 = vmatprep.subr.mxu0 0.0
      %269 = vmatpush1.msra.mxu0 0.0
      %270 = vmatprep.subr.mxu0 0.0
      %271 = vmatpush1.msra.mxu0 0.0
      %272 = vmatprep.subr.mxu0 0.0
      %273 = vmatpush1.msra.mxu0 0.0
      %274 = vmatprep.subr.mxu0 0.0
      %275 = vmatpush1.msra.mxu0 0.0
      %276 = vmatprep.subr.mxu0 0.0
      %277 = vmatpush1.msra.mxu0 0.0
      %278 = vmatprep.subr.mxu0 0.0
      %279 = vmatpush1.msra.mxu0 0.0
      %280 = vmatprep.subr.mxu0 0.0
      %281 = vmatpush1.msra.mxu0 0.0
      %282 = vmatprep.subr.mxu0 0.0
      %283 = vmatpush1.msra.mxu0 0.0
      %284 = vmatprep.subr.mxu0 0.0
      %285 = vmatpush1.msra.mxu0 0.0
      %286 = vmatprep.subr.mxu0 0.0
      %287 = vmatpush1.msra.mxu0 0.0
      %288 = vmatprep.subr.mxu0 0.0
      %289 = vmatpush1.msra.mxu0 0.0
      %290 = vmatprep.mubr.f32.mxu0 0.0
      %291 = vmatmul.mubr.f32.gmra.mrb[0].mxu0 %v209
      %v292 = vpop.f32.mrb[0].mxu0
      %v293 = vadd.f32 0.0, %v292
      %v294 = vpop.f32.mrb[0].mxu0
      %295 = vdwg.mxu0
      %296 = vst [vmem:[#allocation9] sm:$0x3] %v293
    $region41: #{tpu_custom_call.1} parent=1 // pred_fallthru
      _
    // Predicated region
    $region42: #{tpu_custom_call.1} parent=1 // pred_check
      _
    $region43: #{tpu_custom_call.1} parent=1 // pred_check_branch
      %298 = sbr.rel (0) target = $region45
    $region44: #{tpu_custom_call.1} parent=1 // pred_region
      %s300 = ssub.s32 32, 32
      %301 = vsyncadd [#allocation5], %s300
      %s303 = sshll.u32 [#allocation9], 4
      %s304 = int_to_ptr.vmem [resolvable:$true] %s303
      %306 = dma.vmem_to_hbm [thread:$0]  %s304, 32, %s5, [#allocation5]
    $region45: #{tpu_custom_call.1} parent=1 // pred_fallthru
      _
    // Predicated region
    $region46: #{tpu_custom_call.1} parent=1 // pred_check
      _
    $region47: #{tpu_custom_call.1} parent=1 // pred_check_branch
      %308 = sbr.rel (0) target = $region49
    $region48: #{tpu_custom_call.1} parent=1 // pred_region
      %309 = dma.done [#allocation5], 32
    $region49: #{tpu_custom_call.1} parent=1 // pred_fallthru
      _
    %310 = vsyncpa [#allocation4], 1
    %311 = vsyncpa [#allocation7], 1
    %312 = vsyncpa [#allocation5], 1

// kernel: tpu_custom_call.1
$region0: #{tpu_custom_call.1}
  #allocation0 [shape = 'u32[]', space=smem, size = 0x4, offset = 0x4, fixed_abs, tag = 'smem constant byte address 0x4 - core index']
  #allocation1 [shape = 'u32[144,128]{1,0:T(1,128)}', space=vmem, size = 0x12000, scoped, tag = 'internal scratch']
  #allocation2 [shape = 'f32[2,32]{1,0:T(2,128)}', space=vmem, size = 0x400, scoped, tag = 'scratch operand']
  %s0 = inlined_call_operand.hbm [shape: bf16[2,8,32], index: 0, kind: input, shape index: {}]
  %s1 = inlined_call_operand.vmem [shape: f32[2,8], index: 1, kind: input, shape index: {}]
  %s2 = inlined_call_operand.vmem [shape: f32[2,1], index: 2, kind: input, shape index: {}]
  %s3 = inlined_call_operand.hbm [shape: f32[128,128], index: 3, kind: input, shape index: {}]
  %s4 = inlined_call_operand.hbm [shape: f32[32,128], index: 4, kind: input, shape index: {}]
  %s5 = inlined_call_operand.hbm [shape: f32[2,128], index: 5, kind: output, shape index: {}]
  %s6 = sld [smem:[#allocation0]]
  $region50: #{tpu_custom_call.1} parent=0
    _
  %s8 = ssub.s32 1, %s6
  %s9 = scalar_select 0, %s8, %s6
  $region1: #{tpu_custom_call.1} parent=0
    #allocation3 [shape = 'u8[4096]{0}', space=vmem, size = 0x1000, scoped, tag = 'input window, operand 0, single buffered']
    #allocation4 [shape = 's32[1]{0}', space=sflag, size = 0x4, scoped, tag = 'scoped memory for tpu_custom_call.1']
    #allocation5 [shape = 's32[1]{0}', space=sflag, size = 0x4, scoped, tag = 'scoped memory for tpu_custom_call.1']
    #allocation6 [shape = 'u8[65536]{0}', space=vmem, size = 0x10000, scoped, tag = 'input window, operand 3, single buffered']
    #allocation7 [shape = 's32[1]{0}', space=sflag, size = 0x4, scoped, tag = 'scoped memory for tpu_custom_call.1']
    #allocation8 [shape = 'u8[16384]{0}', space=vmem, size = 0x4000, scoped, tag = 'input window, operand 4, single buffered']
    #allocation9 [shape = 'u8[1024]{0}', space=vmem, size = 0x400, scoped, tag = 'output window, operand 0, single buffered']
    %10 = vsyncpa [#allocation4], 0
    %11 = vsyncpa [#allocation7], 0
    %12 = vsyncpa [#allocation5], 0
    // Predicated region
    $region2: #{tpu_custom_call.1} parent=1 // pred_check
      _
    $region3: #{tpu_custom_call.1} parent=1 // pred_check_branch
      %14 = sbr.rel (0) target = $region5
    $region4: #{tpu_custom_call.1} parent=1 // pred_region
      %s16 = ssub.s32 128, 128
      %17 = vsyncadd [#allocation4], %s16
      %s18 = sshll.u32 [#allocation3], 4
      %s19 = int_to_ptr.vmem [resolvable:$true] %s18
      %24 = dma.hbm_to_vmem [thread:$0]  %s0, 128, %s19, [#allocation4], 64, 64, 4
    $region5: #{tpu_custom_call.1} parent=1 // pred_fallthru
      _
    // Predicated region
    $region6: #{tpu_custom_call.1} parent=1 // pred_check
      _
    $region7: #{tpu_custom_call.1} parent=1 // pred_check_branch
      %26 = sbr.rel (0) target = $region9
    $region8: #{tpu_custom_call.1} parent=1 // pred_region
      _
    $region9: #{tpu_custom_call.1} parent=1 // pred_fallthru
      _
    // Predicated region
    $region10: #{tpu_custom_call.1} parent=1 // pred_check
      _
    $region11: #{tpu_custom_call.1} parent=1 // pred_check_branch
      %28 = sbr.rel (0) target = $region13
    $region12: #{tpu_custom_call.1} parent=1 // pred_region
      _
    $region13: #{tpu_custom_call.1} parent=1 // pred_fallthru
      _
    // Predicated region
    $region14: #{tpu_custom_call.1} parent=1 // pred_check
      _
    $region15: #{tpu_custom_call.1} parent=1 // pred_check_branch
      %30 = sbr.rel (0) target = $region17
    $region16: #{tpu_custom_call.1} parent=1 // pred_region
      %s32 = ssub.s32 2048, 2048
      %33 = vsyncadd [#allocation7], %s32
      %s34 = sshll.u32 [#allocation6], 4
      %s35 = int_to_ptr.vmem [resolvable:$true] %s34
      %40 = dma.hbm_to_vmem [thread:$0]  %s3, 2048, %s35, [#allocation7], 128, 128, 8
    $region17: #{tpu_custom_call.1} parent=1 // pred_fallthru
      _
    // Predicated region
    $region18: #{tpu_custom_call.1} parent=1 // pred_check
      _
    $region19: #{tpu_custom_call.1} parent=1 // pred_check_branch
      %42 = sbr.rel (0) target = $region21
    $region20: #{tpu_custom_call.1} parent=1 // pred_region
      %s44 = ssub.s32 512, 512
      %45 = vsyncadd [#allocation7], %s44
      %s46 = sshll.u32 [#allocation8], 4
      %s47 = int_to_ptr.vmem [resolvable:$true] %s46
      %52 = dma.hbm_to_vmem [thread:$0]  %s4, 512, %s47, [#allocation7], 128, 128, 8
    $region21: #{tpu_custom_call.1} parent=1 // pred_fallthru
      _
    // Predicated region
    $region22: #{tpu_custom_call.1} parent=1 // pred_check
      _
    $region23: #{tpu_custom_call.1} parent=1 // pred_check_branch
      %54 = sbr.rel (0) target = $region25
    $region24: #{tpu_custom_call.1} parent=1 // pred_region
      %55 = dma.done [#allocation4], 128
    $region25: #{tpu_custom_call.1} parent=1 // pred_fallthru
      _
    // Predicated region
    $region26: #{tpu_custom_call.1} parent=1 // pred_check
      _
    $region27: #{tpu_custom_call.1} parent=1 // pred_check_branch
      %57 = sbr.rel (0) target = $region29
    $region28: #{tpu_custom_call.1} parent=1 // pred_region
      %58 = dma.done [#allocation7], 2048
    $region29: #{tpu_custom_call.1} parent=1 // pred_fallthru
      _
    // Predicated region
    $region30: #{tpu_custom_call.1} parent=1 // pred_check
      _
    $region31: #{tpu_custom_call.1} parent=1 // pred_check_branch
      %60 = sbr.rel (0) target = $region33
    $region32: #{tpu_custom_call.1} parent=1 // pred_region
      %61 = dma.done [#allocation7], 512
    $region33: #{tpu_custom_call.1} parent=1 // pred_fallthru
      _
    %p62 = scmp.eq.s32.totalorder 0, 0
    // Predicated region
    $region34: #{tpu_custom_call.1} parent=1 // pred_check
      %p63 = pneg %p62
    $region35: #{tpu_custom_call.1} parent=1 // pred_check_branch
      %65 = sbr.rel (%p63) target = $region37
    $region36: #{tpu_custom_call.1} parent=1 // pred_region
      %vm66 = vcmask 254976
      %67 = vst.msk [vmem:[#allocation2] sm:$0x3] %vm66, 0.0
    $region37: #{tpu_custom_call.1} parent=1 // pred_fallthru
      _
    %v68 = vld [vmem:[#allocation3] sm:$0xf]
    %v69 = vld [vmem:[#allocation3 + $0x4] sm:$0xf]
    %v70 = vunpack.c.l.bf16 %v68
    %v71 = vunpack.c.l.bf16 %v69
    %v72 = vld [vmem:[%s1] sm:$0x3]
    %v73 = vld [vmem:[#allocation2] sm:$0x3]
    %v74 = vlaneseq
    %v75 = vshrl.u32 %v74, 7
    %v76 = vsub.s32 0, %v75
    %v77 = vrot.slane %v72, %v76
    %79 = vbcast.lane.b32.xlu0 %v77, 256
    %v80 = vpop.permute.xlu0 %79
    %v81 = vlaneseq
    %v82 = vshrl.u32 %v81, 7
    %v83 = vsub.s32 1, %v82
    %v84 = vrot.slane %v72, %v83
    %86 = vbcast.lane.b32.xlu0 %v84, 256
    %v87 = vpop.permute.xlu0 %86
    %v88 = vmul.f32 %v70, %v80
    %v89 = vmul.f32 %v71, %v87
    %vm90 = vcmask 261120
    %v91 = vsel %vm90, %v88, 0.0
    %v92 = vrot.slane %v91, 4
    %v93 = vadd.f32 %v91, %v92
    %v94 = vrot.slane %v93, 2
    %v95 = vadd.f32 %v93, %v94
    %v96 = vrot.slane %v95, 1
    %v97 = vadd.f32 %v95, %v96
    %v98 = vsel %vm90, %v89, 0.0
    %v99 = vrot.slane %v98, 4
    %v100 = vadd.f32 %v98, %v99
    %v101 = vrot.slane %v100, 2
    %v102 = vadd.f32 %v100, %v101
    %v103 = vrot.slane %v102, 1
    %v104 = vadd.f32 %v102, %v103
    %vm107 = vcmask 1041409
    %v108 = vsel %vm107, %v104, %v97
    %v110 = vadd.f32 %v73, %v108
    %vm111 = vcmask 254976
    %112 = vst.msk [vmem:[#allocation2] sm:$0x3] %vm111, %v110
    // Predicated region
    $region38: #{tpu_custom_call.1} parent=1 // pred_check
      %p113 = pneg %p62
    $region39: #{tpu_custom_call.1} parent=1 // pred_check_branch
      %115 = sbr.rel (%p113) target = $region41
    $region40: #{tpu_custom_call.1} parent=1 // pred_region
      %v116 = vld [vmem:[#allocation2] sm:$0x3]
      %v117 = vld [vmem:[%s2] sm:$0x3]
      %119 = vset.pattern.permute.xlu0 0
      %120 = vperm.xlu0 %119, %v117
      %v121 = vpop.permute.xlu0 %120
      %v123 = vrcp.pop %v121
      %v124 = vmul.f32 %v116, %v123
      %v125 = vld [vmem:[#allocation8] sm:$0xff]
      %v126 = vld [vmem:[#allocation8 + $0x8] sm:$0xff]
      %v127 = vld [vmem:[#allocation8 + $0x10] sm:$0xff]
      %v128 = vld [vmem:[#allocation8 + $0x18] sm:$0xff]
      %v130 = vsel %vm90, %v124, 0
      %132 = vmatprep.subr.mxu0 0.0
      %133 = vmatpush1.msra.mxu0 %v125
      %134 = vmatprep.subr.mxu0 0.0
      %135 = vmatpush1.msra.mxu0 %v126
      %136 = vmatprep.subr.mxu0 0.0
      %137 = vmatpush1.msra.mxu0 %v127
      %138 = vmatprep.subr.mxu0 0.0
      %139 = vmatpush1.msra.mxu0 %v128
      %140 = vmatprep.subr.mxu0 0.0
      %141 = vmatpush1.msra.mxu0 0.0
      %142 = vmatprep.subr.mxu0 0.0
      %143 = vmatpush1.msra.mxu0 0.0
      %144 = vmatprep.subr.mxu0 0.0
      %145 = vmatpush1.msra.mxu0 0.0
      %146 = vmatprep.subr.mxu0 0.0
      %147 = vmatpush1.msra.mxu0 0.0
      %148 = vmatprep.subr.mxu0 0.0
      %149 = vmatpush1.msra.mxu0 0.0
      %150 = vmatprep.subr.mxu0 0.0
      %151 = vmatpush1.msra.mxu0 0.0
      %152 = vmatprep.subr.mxu0 0.0
      %153 = vmatpush1.msra.mxu0 0.0
      %154 = vmatprep.subr.mxu0 0.0
      %155 = vmatpush1.msra.mxu0 0.0
      %156 = vmatprep.subr.mxu0 0.0
      %157 = vmatpush1.msra.mxu0 0.0
      %158 = vmatprep.subr.mxu0 0.0
      %159 = vmatpush1.msra.mxu0 0.0
      %160 = vmatprep.subr.mxu0 0.0
      %161 = vmatpush1.msra.mxu0 0.0
      %162 = vmatprep.subr.mxu0 0.0
      %163 = vmatpush1.msra.mxu0 0.0
      %164 = vmatprep.subr.mxu0 0.0
      %165 = vmatpush1.msra.mxu0 0.0
      %166 = vmatprep.subr.mxu0 0.0
      %167 = vmatpush1.msra.mxu0 0.0
      %168 = vmatprep.subr.mxu0 0.0
      %169 = vmatpush1.msra.mxu0 0.0
      %170 = vmatprep.subr.mxu0 0.0
      %171 = vmatpush1.msra.mxu0 0.0
      %172 = vmatprep.subr.mxu0 0.0
      %173 = vmatpush1.msra.mxu0 0.0
      %174 = vmatprep.subr.mxu0 0.0
      %175 = vmatpush1.msra.mxu0 0.0
      %176 = vmatprep.subr.mxu0 0.0
      %177 = vmatpush1.msra.mxu0 0.0
      %178 = vmatprep.subr.mxu0 0.0
      %179 = vmatpush1.msra.mxu0 0.0
      %180 = vmatprep.subr.mxu0 0.0
      %181 = vmatpush1.msra.mxu0 0.0
      %182 = vmatprep.subr.mxu0 0.0
      %183 = vmatpush1.msra.mxu0 0.0
      %184 = vmatprep.subr.mxu0 0.0
      %185 = vmatpush1.msra.mxu0 0.0
      %186 = vmatprep.subr.mxu0 0.0
      %187 = vmatpush1.msra.mxu0 0.0
      %188 = vmatprep.subr.mxu0 0.0
      %189 = vmatpush1.msra.mxu0 0.0
      %190 = vmatprep.subr.mxu0 0.0
      %191 = vmatpush1.msra.mxu0 0.0
      %192 = vmatprep.subr.mxu0 0.0
      %193 = vmatpush1.msra.mxu0 0.0
      %194 = vmatprep.subr.mxu0 0.0
      %195 = vmatpush1.msra.mxu0 0.0
      %196 = vmatprep.mubr.f32.mxu0 0.0
      %197 = vmatmul.mubr.f32.gmra.mrb[0].mxu0 %v130
      %v198 = vpop.f32.mrb[0].mxu0
      %v199 = vadd.f32 0.0, %v198
      %v200 = vpop.f32.mrb[0].mxu0
      %201 = vdwg.mxu0
      %v202 = vmul.f32 %v199, %v199
      %vm203 = vcmask 1041408
      %v204 = vsel %vm203, %v202, 0.0
      %205 = vadd.xlane.f32.xlu0 %v204
      %v206 = vpop.xlane.xlu0 %205
      %v207 = vmax.f32 %v206, 1e-16
      %v208 = vrsqrt.pop %v207
      %v209 = vmul.f32 %v199, %v208
      %v210 = vld [vmem:[#allocation6] sm:$0xff]
      %v211 = vld [vmem:[#allocation6 + $0x8] sm:$0xff]
      %v212 = vld [vmem:[#allocation6 + $0x10] sm:$0xff]
      %v213 = vld [vmem:[#allocation6 + $0x18] sm:$0xff]
      %v214 = vld [vmem:[#allocation6 + $0x20] sm:$0xff]
      %v215 = vld [vmem:[#allocation6 + $0x28] sm:$0xff]
      %v216 = vld [vmem:[#allocation6 + $0x30] sm:$0xff]
      %v217 = vld [vmem:[#allocation6 + $0x38] sm:$0xff]
      %v218 = vld [vmem:[#allocation6 + $0x40] sm:$0xff]
      %v219 = vld [vmem:[#allocation6 + $0x48] sm:$0xff]
      %v220 = vld [vmem:[#allocation6 + $0x50] sm:$0xff]
      %v221 = vld [vmem:[#allocation6 + $0x58] sm:$0xff]
      %v222 = vld [vmem:[#allocation6 + $0x60] sm:$0xff]
      %v223 = vld [vmem:[#allocation6 + $0x68] sm:$0xff]
      %v224 = vld [vmem:[#allocation6 + $0x70] sm:$0xff]
      %v225 = vld [vmem:[#allocation6 + $0x78] sm:$0xff]
      %226 = vmatprep.subr.mxu0 0.0
      %227 = vmatpush1.msra.mxu0 %v210
      %228 = vmatprep.subr.mxu0 0.0
      %229 = vmatpush1.msra.mxu0 %v211
      %230 = vmatprep.subr.mxu0 0.0
      %231 = vmatpush1.msra.mxu0 %v212
      %232 = vmatprep.subr.mxu0 0.0
      %233 = vmatpush1.msra.mxu0 %v213
      %234 = vmatprep.subr.mxu0 0.0
      %235 = vmatpush1.msra.mxu0 %v214
      %236 = vmatprep.subr.mxu0 0.0
      %237 = vmatpush1.msra.mxu0 %v215
      %238 = vmatprep.subr.mxu0 0.0
      %239 = vmatpush1.msra.mxu0 %v216
      %240 = vmatprep.subr.mxu0 0.0
      %241 = vmatpush1.msra.mxu0 %v217
      %242 = vmatprep.subr.mxu0 0.0
      %243 = vmatpush1.msra.mxu0 %v218
      %244 = vmatprep.subr.mxu0 0.0
      %245 = vmatpush1.msra.mxu0 %v219
      %246 = vmatprep.subr.mxu0 0.0
      %247 = vmatpush1.msra.mxu0 %v220
      %248 = vmatprep.subr.mxu0 0.0
      %249 = vmatpush1.msra.mxu0 %v221
      %250 = vmatprep.subr.mxu0 0.0
      %251 = vmatpush1.msra.mxu0 %v222
      %252 = vmatprep.subr.mxu0 0.0
      %253 = vmatpush1.msra.mxu0 %v223
      %254 = vmatprep.subr.mxu0 0.0
      %255 = vmatpush1.msra.mxu0 %v224
      %256 = vmatprep.subr.mxu0 0.0
      %257 = vmatpush1.msra.mxu0 %v225
      %258 = vmatprep.subr.mxu0 0.0
      %259 = vmatpush1.msra.mxu0 0.0
      %260 = vmatprep.subr.mxu0 0.0
      %261 = vmatpush1.msra.mxu0 0.0
      %262 = vmatprep.subr.mxu0 0.0
      %263 = vmatpush1.msra.mxu0 0.0
      %264 = vmatprep.subr.mxu0 0.0
      %265 = vmatpush1.msra.mxu0 0.0
      %266 = vmatprep.subr.mxu0 0.0
      %267 = vmatpush1.msra.mxu0 0.0
      %268 = vmatprep.subr.mxu0 0.0
      %269 = vmatpush1.msra.mxu0 0.0
      %270 = vmatprep.subr.mxu0 0.0
      %271 = vmatpush1.msra.mxu0 0.0
      %272 = vmatprep.subr.mxu0 0.0
      %273 = vmatpush1.msra.mxu0 0.0
      %274 = vmatprep.subr.mxu0 0.0
      %275 = vmatpush1.msra.mxu0 0.0
      %276 = vmatprep.subr.mxu0 0.0
      %277 = vmatpush1.msra.mxu0 0.0
      %278 = vmatprep.subr.mxu0 0.0
      %279 = vmatpush1.msra.mxu0 0.0
      %280 = vmatprep.subr.mxu0 0.0
      %281 = vmatpush1.msra.mxu0 0.0
      %282 = vmatprep.subr.mxu0 0.0
      %283 = vmatpush1.msra.mxu0 0.0
      %284 = vmatprep.subr.mxu0 0.0
      %285 = vmatpush1.msra.mxu0 0.0
      %286 = vmatprep.subr.mxu0 0.0
      %287 = vmatpush1.msra.mxu0 0.0
      %288 = vmatprep.subr.mxu0 0.0
      %289 = vmatpush1.msra.mxu0 0.0
      %290 = vmatprep.mubr.f32.mxu0 0.0
      %291 = vmatmul.mubr.f32.gmra.mrb[0].mxu0 %v209
      %v292 = vpop.f32.mrb[0].mxu0
      %v293 = vadd.f32 0.0, %v292
      %v294 = vpop.f32.mrb[0].mxu0
      %295 = vdwg.mxu0
      %296 = vst [vmem:[#allocation9] sm:$0x3] %v293
    $region41: #{tpu_custom_call.1} parent=1 // pred_fallthru
      _
    // Predicated region
    $region42: #{tpu_custom_call.1} parent=1 // pred_check
      _
    $region43: #{tpu_custom_call.1} parent=1 // pred_check_branch
      %298 = sbr.rel (0) target = $region45
    $region44: #{tpu_custom_call.1} parent=1 // pred_region
      %s300 = ssub.s32 32, 32
      %301 = vsyncadd [#allocation5], %s300
      %s303 = sshll.u32 [#allocation9], 4
      %s304 = int_to_ptr.vmem [resolvable:$true] %s303
      %306 = dma.vmem_to_hbm [thread:$0]  %s304, 32, %s5, [#allocation5]
    $region45: #{tpu_custom_call.1} parent=1 // pred_fallthru
      _
    // Predicated region
    $region46: #{tpu_custom_call.1} parent=1 // pred_check
      _
    $region47: #{tpu_custom_call.1} parent=1 // pred_check_branch
      %308 = sbr.rel (0) target = $region49
    $region48: #{tpu_custom_call.1} parent=1 // pred_region
      %309 = dma.done [#allocation5], 32
    $region49: #{tpu_custom_call.1} parent=1 // pred_fallthru
      _
    %310 = vsyncpa [#allocation4], 1
    %311 = vsyncpa [#allocation7], 1
    %312 = vsyncpa [#allocation5], 1

</llo_original>
